<compile_context>
chip_gen: v6e
topology: v6e:2x2x1
jax: 0.10.0
libtpu: 0.0.40
codegen_flags: <defaults>
</compile_context>

<pallas_src>
import jax
import jax.numpy as jnp
import numpy as np
from jax.experimental import pallas as pl
from jax.experimental.pallas import tpu as pltpu

VSUB = 128   # vocab sub-block width (lane width / MXU K granularity)
SC = 8       # sequence positions handled per inner fori_loop iteration


def _round_up(x, m):
    return ((x + m - 1) // m) * m


def _block_spec(shape, index_map, buffers=None):
    """BlockSpec with an optional pipeline buffer-count override (VMEM reclaim)."""
    if buffers is not None:
        try:
            return pl.BlockSpec(shape, index_map, pipeline_mode=pl.Buffered(buffers))
        except Exception:      # older JAX without pipeline_mode: keep default
            pass
    return pl.BlockSpec(shape, index_map)


def _sentence_classifier_kernel(ids_ref, len_ref, emb_ref, wenc_ref, benc_ref,
                                wcls_ref, bcls_ref, out_ref, acc_ref):
    # ids_ref : [nC, bt, SC] int32, pre-masked (-1 = padding / beyond length)
    # emb_ref : [nVB, 128, D] embedding rows of this grid step's vocab tile
    # acc_ref : [bt, D] f32 pooled-sum accumulator, persists across v steps
    v = pl.program_id(1)
    nv = pl.num_programs(1)
    nC, bt, sc = ids_ref.shape
    nVB, vsub, d = emb_ref.shape
    s_total = nC * sc

    @pl.when(v == 0)
    def _():
        acc_ref[...] = jnp.zeros_like(acc_ref)

    # Vocab-id iota hoisted out of all loops (JAX does not CSE broadcasts).
    vio0 = jax.lax.broadcasted_iota(jnp.int32, (1, vsub), 1)
    v_base = v * (nVB * vsub)

    # Integer counts are exact in bf16 only while <= 256; otherwise keep f32
    # operands for the MXU dot (correctness concern from review).
    exact_bf16 = s_total <= 256

    def vocab_block(vb, carry):
        vio = vio0 + (v_base + vb * vsub)                       # [1, vsub]

        def seq_chunk(c, counts):
            ids_c = ids_ref[c]                                  # [bt, sc] (pre-masked)
            for j in range(sc):                                 # small static unroll
                counts = counts + (ids_c[:, j:j + 1] == vio).astype(jnp.int32)
            return counts

        counts = jax.lax.fori_loop(0, nC, seq_chunk,
                                   jnp.zeros((bt, vsub), jnp.int32))

        emb_blk = emb_ref[vb]                                   # [vsub, d]
        counts_f = counts.astype(jnp.float32)                   # single cast site
        if exact_bf16:
            lhs = counts_f.astype(emb_blk.dtype)
            rhs = emb_blk
        else:
            lhs = counts_f
            rhs = emb_blk.astype(jnp.float32)
        # pooled-sum update on the MXU: [bt, 128] @ [128, d], f32 accumulation.
        acc_ref[...] += jnp.dot(lhs, rhs, preferred_element_type=jnp.float32)
        return carry

    jax.lax.fori_loop(0, nVB, vocab_block, 0)

    # Finalize once the V reduction is complete: mean -> Linear+tanh -> classifier.
    @pl.when(v == nv - 1)
    def _():
        denom = jnp.maximum(len_ref[...].astype(jnp.float32), 1.0)      # [bt, 1]
        pooled = acc_ref[...] / denom                                   # [bt, d]
        h = jnp.tanh(
            jnp.dot(pooled, wenc_ref[...], preferred_element_type=jnp.float32)
            + benc_ref[...])                                            # [bt, H]
        out_ref[...] = (
            jnp.dot(h, wcls_ref[...], preferred_element_type=jnp.float32)
            + bcls_ref[...])                                            # [bt, CP]


def sentence_classifier(ids, lengths, params, *, bt=128, vt=512):
    """ids: [B, S] int32 token ids; lengths: [B] int32. Returns [B] f32 logits."""
    emb, wenc, benc, wcls, bcls = params
    B, S = ids.shape
    V, D = emb.shape
    H = wenc.shape[1]
    C = wcls.shape[1]
    CP = max(128, _round_up(C, 128))      # lane-dense output block width

    # --- hardware-aware sizing ----------------------------------------------
    try:
        phys_vmem = int(pltpu.get_tpu_info().vmem_capacity_bytes)
    except Exception:
        phys_vmem = 64 * 1024 * 1024      # conservative default (v7x per-TC VMEM)

    # Batch tiling: keep >=2 batch tiles alive for the two v7x TensorCores.
    if B <= bt:
        bt = max(8, min(bt, _round_up(max(pl.cdiv(B, 2), 1), 8)))
    Bp = _round_up(B, bt)

    # Vocab tiling: whole table resident in VMEM when it fits the budget,
    # else stream vt-row tiles (vt=512 fills the 256-deep v6e/v7x MXU).
    V128 = _round_up(max(V, 1), VSUB)
    itm = emb.dtype.itemsize
    emb_bytes = V128 * D * itm
    resident = emb_bytes <= (5 * phys_vmem) // 16
    vt_eff = V128 if resident else min(_round_up(vt, VSUB), V128)
    Vp = _round_up(V128, vt_eff)
    n_vocab_steps = Vp // vt_eff
    nVB = vt_eff // VSUB

    # Sequence: pad to a multiple of SC; fold the mask into the ids (-1 never
    # matches any vocab id -> no f32 mask tensor and no AND in the hot loop).
    Sp = _round_up(S, SC)
    nC = Sp // SC
    valid = jnp.arange(S, dtype=jnp.int32)[None, :] < lengths[:, None].astype(jnp.int32)
    ids_m = jnp.where(valid, ids.astype(jnp.int32), -1)
    ids_p = jnp.full((Bp, Sp), -1, jnp.int32).at[:B, :S].set(ids_m)
    ids3 = jnp.transpose(ids_p.reshape(Bp, nC, SC), (1, 0, 2))      # [nC, Bp, SC]

    len_p = jnp.zeros((Bp, 1), jnp.int32).at[:B, 0].set(lengths.astype(jnp.int32))

    emb_p = jnp.zeros((Vp, D), emb.dtype).at[:V].set(emb)
    emb3 = emb_p.reshape(Vp // VSUB, VSUB, D)                       # [Vp/128, 128, D]

    wenc_f = wenc.astype(jnp.float32)
    benc_f = benc.reshape(1, H).astype(jnp.float32)
    wcls_p = jnp.zeros((H, CP), jnp.float32).at[:, :C].set(wcls.astype(jnp.float32))
    bcls_p = jnp.zeros((1, CP), jnp.float32).at[:, :C].set(bcls.astype(jnp.float32))

    grid = (Bp // bt, n_vocab_steps)      # (parallel batch tiles, V reduction)

    # VMEM budget with headroom (covers the no-pipeline_mode fallback too).
    need = vt_eff * D * itm * (1 if resident else 2)
    need += 2 * (Sp * bt * 4) + 2 * (bt * 4)
    need += wenc_f.size * 4 + benc_f.size * 4 + wcls_p.size * 4 + bcls_p.size * 4
    need += 2 * (bt * CP * 4) + bt * D * 4
    vmem_limit = int(min((7 * phys_vmem) // 8, max(32 * 1024 * 1024, 2 * need)))

    cost = pl.CostEstimate(
        flops=int(2 * Bp * Vp * D + 2 * Bp * D * H + 2 * Bp * H * CP),
        transcendentals=int(Bp * H),
        bytes_accessed=int(
            emb3.size * itm * (1 if resident else Bp // bt)
            + ids3.size * 4 + Bp * 4
            + wenc_f.size * 4 + benc_f.size * 4 + wcls_p.size * 4 + bcls_p.size * 4
            + Bp * CP * 4),
    )

    out = pl.pallas_call(
        _sentence_classifier_kernel,
        out_shape=jax.ShapeDtypeStruct((Bp, CP), jnp.float32),
        grid=grid,
        in_specs=[
            _block_spec((nC, bt, SC), lambda i, v: (0, i, 0)),            # ids
            _block_spec((bt, 1), lambda i, v: (i, 0)),                    # lengths
            _block_spec((nVB, VSUB, D), lambda i, v: (v, 0, 0),
                        buffers=1 if resident else None),                 # emb tile(s)
            _block_spec((D, H), lambda i, v: (0, 0), buffers=1),          # wenc
            _block_spec((1, H), lambda i, v: (0, 0), buffers=1),          # benc
            _block_spec((H, CP), lambda i, v: (0, 0), buffers=1),         # wcls (padded)
            _block_spec((1, CP), lambda i, v: (0, 0), buffers=1),         # bcls (padded)
        ],
        out_specs=pl.BlockSpec((bt, CP), lambda i, v: (i, 0)),
        scratch_shapes=[pltpu.VMEM((bt, D), jnp.float32)],                # pooled sum
        compiler_params=pltpu.CompilerParams(
            dimension_semantics=("parallel", "arbitrary"),
            vmem_limit_bytes=vmem_limit),
        cost_estimate=cost,
    )(ids3, len_p, emb3, wenc_f, benc_f, wcls_p, bcls_p)

    # .squeeze() (not squeeze(-1)) to match the torch forward exactly.
    return out[:B, :C].squeeze()


def init_params(key, V, D, H, C):
    k0, k1, k2 = jax.random.split(key, 3)
    emb = (0.02 * jax.random.normal(k0, (V, D), jnp.float32)).astype(jnp.bfloat16)
    wenc = jax.random.normal(k1, (D, H), jnp.float32) / np.sqrt(D)
    benc = jnp.zeros((1, H), jnp.float32)
    wcls = jax.random.normal(k2, (H, C), jnp.float32) / np.sqrt(H)
    bcls = jnp.zeros((1, C), jnp.float32)
    return emb, wenc, benc, wcls, bcls


def reference(ids, lengths, params):
    emb, wenc, benc, wcls, bcls = params
    B, S = ids.shape
    mask = (jnp.arange(S)[None, :] < lengths[:, None]).astype(jnp.float32)
    e = emb.astype(jnp.float32)[ids]                              # [B, S, D]
    pooled = (e * mask[:, :, None]).sum(1) / jnp.maximum(mask.sum(1, keepdims=True), 1.0)
    h = jnp.tanh(pooled @ wenc + benc)
    return (h @ wcls + bcls).squeeze()


if __name__ == "__main__":
    V, B, S, D, H, C = 64, 2, 8, 32, 32, 1
    key = jax.random.PRNGKey(0)
    kp, ki = jax.random.split(key)

    params = init_params(kp, V, D, H, C)
    ids = jax.random.randint(ki, (B, S), 0, V, dtype=jnp.int32)
    lengths = jnp.array([S, 5], dtype=jnp.int32)

    out = jax.block_until_ready(sentence_classifier(ids, lengths, params))
    ref = reference(ids, lengths, params)
    assert out.shape == (B,)
    np.testing.assert_allclose(np.asarray(out), np.asarray(ref), rtol=2e-4, atol=2e-5)
    print("KERNEL_OK")
</pallas_src>

<mosaic_0001>
module attributes {stable_mosaic.version = 11 : i64} {
  func.func @_sentence_classifier_kernel(%arg0: i32, %arg1: i32, %arg2: memref<1x8x8xi32, #tpu.memory_space<vmem>>, %arg3: memref<8x1xi32, #tpu.memory_space<vmem>>, %arg4: memref<1x128x32xbf16, #tpu.memory_space<vmem>>, %arg5: memref<32x32xf32, #tpu.memory_space<vmem>>, %arg6: memref<1x32xf32, #tpu.memory_space<vmem>>, %arg7: memref<32x128xf32, #tpu.memory_space<vmem>>, %arg8: memref<1x128xf32, #tpu.memory_space<vmem>>, %arg9: memref<8x128xf32, #tpu.memory_space<vmem>>, %arg10: memref<8x32xf32, #tpu.memory_space<vmem>>) attributes {dimension_semantics = [#tpu.dimension_semantics<parallel>, #tpu.dimension_semantics<arbitrary>], iteration_bounds = array<i64: 1, 1>, scalar_prefetch = 0 : i64, scratch_operands = 1 : i64, tpu.core_type = #tpu.core_type<tc>, window_params = [{transform_indices = @transform_0, window_bounds = array<i64: 1, 8, 8>}, {transform_indices = @transform_1, window_bounds = array<i64: 8, 1>}, {pipeline_mode = #tpu.pipeline_mode<synchronous>, transform_indices = @transform_2, window_bounds = array<i64: 1, 128, 32>}, {pipeline_mode = #tpu.pipeline_mode<synchronous>, transform_indices = @transform_3, window_bounds = array<i64: 32, 32>}, {pipeline_mode = #tpu.pipeline_mode<synchronous>, transform_indices = @transform_4, window_bounds = array<i64: 1, 32>}, {pipeline_mode = #tpu.pipeline_mode<synchronous>, transform_indices = @transform_5, window_bounds = array<i64: 32, 128>}, {pipeline_mode = #tpu.pipeline_mode<synchronous>, transform_indices = @transform_6, window_bounds = array<i64: 1, 128>}, {transform_indices = @transform_7, window_bounds = array<i64: 8, 128>}]} {
    %c0_i32 = arith.constant 0 : i32
    %0 = arith.cmpi eq, %arg1, %c0_i32 : i32
    %1 = arith.extui %0 : i1 to i32
    %c0_i32_0 = arith.constant 0 : i32
    %2 = arith.cmpi ne, %1, %c0_i32_0 : i32
    scf.if %2 {
      %cst_15 = arith.constant 0.000000e+00 : f32
      %73 = vector.broadcast %cst_15 : f32 to vector<8x32xf32>
      %c0_16 = arith.constant 0 : index
      %c0_17 = arith.constant 0 : index
      %74 = vector.load %arg10[%c0_16, %c0_17] : memref<8x32xf32, #tpu.memory_space<vmem>>, vector<8x32xf32>
      tpu.vector_store %arg10[%c0_16, %c0_17], %73 {strides = array<i32>} : memref<8x32xf32, #tpu.memory_space<vmem>>, vector<8x32xf32>,
    } else {
    }
    %3 = tpu.iota {dimensions = array<i32: 1>} : vector<1x128xi32>
    %c128_i32 = arith.constant 128 : i32
    %4 = arith.muli %arg1, %c128_i32 : i32
    %c0_i32_1 = arith.constant 0 : i32
    %c128_i32_2 = arith.constant 128 : i32
    %5 = arith.muli %c0_i32_1, %c128_i32_2 : i32
    %6 = arith.addi %4, %5 : i32
    %7 = vector.broadcast %6 : i32 to vector<1x128xi32>
    %8 = arith.addi %3, %7 : vector<1x128xi32>
    %c0_i32_3 = arith.constant 0 : i32
    %9 = vector.broadcast %c0_i32_3 : i32 to vector<8x128xi32>
    %c0_i32_4 = arith.constant 0 : i32
    %10 = arith.index_cast %c0_i32_4 : i32 to index
    %c0 = arith.constant 0 : index
    %c0_5 = arith.constant 0 : index
    %11 = vector.load %arg2[%10, %c0, %c0_5] : memref<1x8x8xi32, #tpu.memory_space<vmem>>, vector<1x8x8xi32>
    %12 = vector.shape_cast %11 : vector<1x8x8xi32> to vector<8x8xi32>
    %13 = vector.extract_strided_slice %12 {offsets = [0, 0], sizes = [8, 1], strides = [1, 1]} : vector<8x8xi32> to vector<8x1xi32>
    %14 = vector.broadcast %13 : vector<8x1xi32> to vector<8x128xi32>
    %15 = vector.broadcast %8 : vector<1x128xi32> to vector<8x128xi32>
    %16 = arith.cmpi eq, %14, %15 : vector<8x128xi32>
    %17 = arith.extui %16 : vector<8x128xi1> to vector<8x128xi32>
    %18 = arith.addi %9, %17 : vector<8x128xi32>
    %19 = vector.extract_strided_slice %12 {offsets = [0, 1], sizes = [8, 1], strides = [1, 1]} : vector<8x8xi32> to vector<8x1xi32>
    %20 = vector.broadcast %19 : vector<8x1xi32> to vector<8x128xi32>
    %21 = vector.broadcast %8 : vector<1x128xi32> to vector<8x128xi32>
    %22 = arith.cmpi eq, %20, %21 : vector<8x128xi32>
    %23 = arith.extui %22 : vector<8x128xi1> to vector<8x128xi32>
    %24 = arith.addi %18, %23 : vector<8x128xi32>
    %25 = vector.extract_strided_slice %12 {offsets = [0, 2], sizes = [8, 1], strides = [1, 1]} : vector<8x8xi32> to vector<8x1xi32>
    %26 = vector.broadcast %25 : vector<8x1xi32> to vector<8x128xi32>
    %27 = vector.broadcast %8 : vector<1x128xi32> to vector<8x128xi32>
    %28 = arith.cmpi eq, %26, %27 : vector<8x128xi32>
    %29 = arith.extui %28 : vector<8x128xi1> to vector<8x128xi32>
    %30 = arith.addi %24, %29 : vector<8x128xi32>
    %31 = vector.extract_strided_slice %12 {offsets = [0, 3], sizes = [8, 1], strides = [1, 1]} : vector<8x8xi32> to vector<8x1xi32>
    %32 = vector.broadcast %31 : vector<8x1xi32> to vector<8x128xi32>
    %33 = vector.broadcast %8 : vector<1x128xi32> to vector<8x128xi32>
    %34 = arith.cmpi eq, %32, %33 : vector<8x128xi32>
    %35 = arith.extui %34 : vector<8x128xi1> to vector<8x128xi32>
    %36 = arith.addi %30, %35 : vector<8x128xi32>
    %37 = vector.extract_strided_slice %12 {offsets = [0, 4], sizes = [8, 1], strides = [1, 1]} : vector<8x8xi32> to vector<8x1xi32>
    %38 = vector.broadcast %37 : vector<8x1xi32> to vector<8x128xi32>
    %39 = vector.broadcast %8 : vector<1x128xi32> to vector<8x128xi32>
    %40 = arith.cmpi eq, %38, %39 : vector<8x128xi32>
    %41 = arith.extui %40 : vector<8x128xi1> to vector<8x128xi32>
    %42 = arith.addi %36, %41 : vector<8x128xi32>
    %43 = vector.extract_strided_slice %12 {offsets = [0, 5], sizes = [8, 1], strides = [1, 1]} : vector<8x8xi32> to vector<8x1xi32>
    %44 = vector.broadcast %43 : vector<8x1xi32> to vector<8x128xi32>
    %45 = vector.broadcast %8 : vector<1x128xi32> to vector<8x128xi32>
    %46 = arith.cmpi eq, %44, %45 : vector<8x128xi32>
    %47 = arith.extui %46 : vector<8x128xi1> to vector<8x128xi32>
    %48 = arith.addi %42, %47 : vector<8x128xi32>
    %49 = vector.extract_strided_slice %12 {offsets = [0, 6], sizes = [8, 1], strides = [1, 1]} : vector<8x8xi32> to vector<8x1xi32>
    %50 = vector.broadcast %49 : vector<8x1xi32> to vector<8x128xi32>
    %51 = vector.broadcast %8 : vector<1x128xi32> to vector<8x128xi32>
    %52 = arith.cmpi eq, %50, %51 : vector<8x128xi32>
    %53 = arith.extui %52 : vector<8x128xi1> to vector<8x128xi32>
    %54 = arith.addi %48, %53 : vector<8x128xi32>
    %55 = vector.extract_strided_slice %12 {offsets = [0, 7], sizes = [8, 1], strides = [1, 1]} : vector<8x8xi32> to vector<8x1xi32>
    %56 = vector.broadcast %55 : vector<8x1xi32> to vector<8x128xi32>
    %57 = vector.broadcast %8 : vector<1x128xi32> to vector<8x128xi32>
    %58 = arith.cmpi eq, %56, %57 : vector<8x128xi32>
    %59 = arith.extui %58 : vector<8x128xi1> to vector<8x128xi32>
    %60 = arith.addi %54, %59 : vector<8x128xi32>
    %c1_i32 = arith.constant 1 : i32
    %61 = arith.index_cast %c0_i32_1 : i32 to index
    %c0_6 = arith.constant 0 : index
    %c0_7 = arith.constant 0 : index
    %62 = vector.load %arg4[%61, %c0_6, %c0_7] : memref<1x128x32xbf16, #tpu.memory_space<vmem>>, vector<1x128x32xbf16>
    %63 = vector.shape_cast %62 : vector<1x128x32xbf16> to vector<128x32xbf16>
    %64 = arith.sitofp %60 : vector<8x128xi32> to vector<8x128xf32>
    %65 = arith.truncf %64 : vector<8x128xf32> to vector<8x128xbf16>
    %c0_8 = arith.constant 0 : index
    %c0_9 = arith.constant 0 : index
    %66 = vector.load %arg10[%c0_8, %c0_9] : memref<8x32xf32, #tpu.memory_space<vmem>>, vector<8x32xf32>
    %cst = arith.constant dense<0.000000e+00> : vector<8x32xf32>
    %67 = tpu.matmul %65, %63, %cst {dimension_numbers = #tpu.dot_dimension_numbers<[1], [0], [0], [1], [0, 0, 1, 1], [], []>} : vector<8x128xbf16>, vector<128x32xbf16>, vector<8x32xf32> -> vector<8x32xf32>
    %68 = arith.addf %66, %67 : vector<8x32xf32>
    %c0_10 = arith.constant 0 : index
    %c0_11 = arith.constant 0 : index
    %69 = vector.load %arg10[%c0_10, %c0_11] : memref<8x32xf32, #tpu.memory_space<vmem>>, vector<8x32xf32>
    tpu.vector_store %arg10[%c0_10, %c0_11], %68 {strides = array<i32>} : memref<8x32xf32, #tpu.memory_space<vmem>>, vector<8x32xf32>,
    %c1_i32_12 = arith.constant 1 : i32
    %c0_i32_13 = arith.constant 0 : i32
    %70 = arith.cmpi eq, %arg1, %c0_i32_13 : i32
    %71 = arith.extui %70 : i1 to i32
    %c0_i32_14 = arith.constant 0 : i32
    %72 = arith.cmpi ne, %71, %c0_i32_14 : i32
    scf.if %72 {
      %c0_15 = arith.constant 0 : index
      %c0_16 = arith.constant 0 : index
      %73 = vector.load %arg3[%c0_15, %c0_16] : memref<8x1xi32, #tpu.memory_space<vmem>>, vector<8x1xi32>
      %74 = arith.sitofp %73 : vector<8x1xi32> to vector<8x1xf32>
      %cst_17 = arith.constant 1.000000e+00 : f32
      %75 = vector.broadcast %cst_17 : f32 to vector<8x1xf32>
      %76 = arith.maximumf %74, %75 : vector<8x1xf32>
      %c0_18 = arith.constant 0 : index
      %c0_19 = arith.constant 0 : index
      %77 = vector.load %arg10[%c0_18, %c0_19] : memref<8x32xf32, #tpu.memory_space<vmem>>, vector<8x32xf32>
      %78 = vector.broadcast %76 : vector<8x1xf32> to vector<8x32xf32>
      %79 = arith.divf %77, %78 : vector<8x32xf32>
      %c0_20 = arith.constant 0 : index
      %c0_21 = arith.constant 0 : index
      %80 = vector.load %arg5[%c0_20, %c0_21] : memref<32x32xf32, #tpu.memory_space<vmem>>, vector<32x32xf32>
      %cst_22 = arith.constant dense<0.000000e+00> : vector<8x32xf32>
      %81 = tpu.matmul %79, %80, %cst_22 {dimension_numbers = #tpu.dot_dimension_numbers<[1], [0], [0], [1], [0, 0, 1, 1], [], []>} : vector<8x32xf32>, vector<32x32xf32>, vector<8x32xf32> -> vector<8x32xf32>
      %c0_23 = arith.constant 0 : index
      %c0_24 = arith.constant 0 : index
      %82 = vector.load %arg6[%c0_23, %c0_24] : memref<1x32xf32, #tpu.memory_space<vmem>>, vector<1x32xf32>
      %83 = vector.broadcast %82 : vector<1x32xf32> to vector<8x32xf32>
      %84 = arith.addf %81, %83 : vector<8x32xf32>
      %85 = math.tanh %84 : vector<8x32xf32>
      %c0_25 = arith.constant 0 : index
      %c0_26 = arith.constant 0 : index
      %86 = vector.load %arg7[%c0_25, %c0_26] : memref<32x128xf32, #tpu.memory_space<vmem>>, vector<32x128xf32>
      %cst_27 = arith.constant dense<0.000000e+00> : vector<8x128xf32>
      %87 = tpu.matmul %85, %86, %cst_27 {dimension_numbers = #tpu.dot_dimension_numbers<[1], [0], [0], [1], [0, 0, 1, 1], [], []>} : vector<8x32xf32>, vector<32x128xf32>, vector<8x128xf32> -> vector<8x128xf32>
      %c0_28 = arith.constant 0 : index
      %c0_29 = arith.constant 0 : index
      %88 = vector.load %arg8[%c0_28, %c0_29] : memref<1x128xf32, #tpu.memory_space<vmem>>, vector<1x128xf32>
      %89 = vector.broadcast %88 : vector<1x128xf32> to vector<8x128xf32>
      %90 = arith.addf %87, %89 : vector<8x128xf32>
      %c0_30 = arith.constant 0 : index
      %c0_31 = arith.constant 0 : index
      %91 = vector.load %arg9[%c0_30, %c0_31] : memref<8x128xf32, #tpu.memory_space<vmem>>, vector<8x128xf32>
      tpu.vector_store %arg9[%c0_30, %c0_31], %90 {strides = array<i32>} : memref<8x128xf32, #tpu.memory_space<vmem>>, vector<8x128xf32>,
    } else {
    }
    return
  }
  func.func @transform_0(%arg0: i32, %arg1: i32) -> (i32, i32, i32) {
    %c0_i32 = arith.constant 0 : i32
    %c0_i32_0 = arith.constant 0 : i32
    %c0_i32_1 = arith.constant 0 : i32
    return %c0_i32, %arg0, %c0_i32_0 : i32, i32, i32
  }
  func.func @transform_1(%arg0: i32, %arg1: i32) -> (i32, i32) {
    %c0_i32 = arith.constant 0 : i32
    %c0_i32_0 = arith.constant 0 : i32
    return %arg0, %c0_i32 : i32, i32
  }
  func.func @transform_2(%arg0: i32, %arg1: i32) -> (i32, i32, i32) {
    %c0_i32 = arith.constant 0 : i32
    %c0_i32_0 = arith.constant 0 : i32
    %c0_i32_1 = arith.constant 0 : i32
    return %arg1, %c0_i32, %c0_i32_0 : i32, i32, i32
  }
  func.func @transform_3(%arg0: i32, %arg1: i32) -> (i32, i32) {
    %c0_i32 = arith.constant 0 : i32
    %c0_i32_0 = arith.constant 0 : i32
    %c0_i32_1 = arith.constant 0 : i32
    return %c0_i32, %c0_i32_0 : i32, i32
  }
  func.func @transform_4(%arg0: i32, %arg1: i32) -> (i32, i32) {
    %c0_i32 = arith.constant 0 : i32
    %c0_i32_0 = arith.constant 0 : i32
    %c0_i32_1 = arith.constant 0 : i32
    return %c0_i32, %c0_i32_0 : i32, i32
  }
  func.func @transform_5(%arg0: i32, %arg1: i32) -> (i32, i32) {
    %c0_i32 = arith.constant 0 : i32
    %c0_i32_0 = arith.constant 0 : i32
    %c0_i32_1 = arith.constant 0 : i32
    return %c0_i32, %c0_i32_0 : i32, i32
  }
  func.func @transform_6(%arg0: i32, %arg1: i32) -> (i32, i32) {
    %c0_i32 = arith.constant 0 : i32
    %c0_i32_0 = arith.constant 0 : i32
    %c0_i32_1 = arith.constant 0 : i32
    return %c0_i32, %c0_i32_0 : i32, i32
  }
  func.func @transform_7(%arg0: i32, %arg1: i32) -> (i32, i32) {
    %c0_i32 = arith.constant 0 : i32
    %c0_i32_0 = arith.constant 0 : i32
    return %arg0, %c0_i32 : i32, i32
  }
}

</mosaic_0001>

<llo_original>
// kernel: tpu_custom_call.1
$region0: #{tpu_custom_call.1}
  #allocation0 [shape = 'u32[]', space=smem, size = 0x4, offset = 0x4, fixed_abs, tag = 'smem constant byte address 0x4 - core index']
  #allocation1 [shape = 'u32[144,128]{1,0:T(1,128)}', space=vmem, size = 0x12000, scoped, tag = 'internal scratch']
  #allocation2 [shape = 'f32[8,32]{1,0:T(8,128)}', space=vmem, size = 0x1000, scoped, tag = 'scratch operand']
  %s0 = inlined_call_operand.vmem [shape: s32[1,8,8], index: 0, kind: input, shape index: {}]
  %s1 = inlined_call_operand.vmem [shape: s32[8,1], index: 1, kind: input, shape index: {}]
  %s2 = inlined_call_operand.vmem [shape: bf16[1,128,32], index: 2, kind: input, shape index: {}]
  %s3 = inlined_call_operand.vmem [shape: f32[32,32], index: 3, kind: input, shape index: {}]
  %s4 = inlined_call_operand.vmem [shape: f32[1,32], index: 4, kind: input, shape index: {}]
  %s5 = inlined_call_operand.vmem [shape: f32[32,128], index: 5, kind: input, shape index: {}]
  %s6 = inlined_call_operand.vmem [shape: f32[1,128], index: 6, kind: input, shape index: {}]
  %s7 = inlined_call_operand.hbm [shape: f32[8,128], index: 7, kind: output, shape index: {}]
  %s8 = sld [smem:[#allocation0]]
  $region46: #{tpu_custom_call.1} parent=0
    _
  %s10 = ssub.s32 1, %s8
  %s11 = scalar_select 0, %s10, %s8
  $region1: #{tpu_custom_call.1} parent=0
    #allocation3 [shape = 'u8[4096]{0}', space=vmem, size = 0x1000, scoped, tag = 'output window, operand 0, single buffered']
    #allocation4 [shape = 's32[1]{0}', space=sflag, size = 0x4, scoped, tag = 'scoped memory for tpu_custom_call.1']
    %12 = vsyncpa [#allocation4], 0
    // Predicated region
    $region2: #{tpu_custom_call.1} parent=1 // pred_check
      _
    $region3: #{tpu_custom_call.1} parent=1 // pred_check_branch
      %14 = sbr.rel (0) target = $region5
    $region4: #{tpu_custom_call.1} parent=1 // pred_region
      _
    $region5: #{tpu_custom_call.1} parent=1 // pred_fallthru
      _
    // Predicated region
    $region6: #{tpu_custom_call.1} parent=1 // pred_check
      _
    $region7: #{tpu_custom_call.1} parent=1 // pred_check_branch
      %16 = sbr.rel (0) target = $region9
    $region8: #{tpu_custom_call.1} parent=1 // pred_region
      _
    $region9: #{tpu_custom_call.1} parent=1 // pred_fallthru
      _
    // Predicated region
    $region10: #{tpu_custom_call.1} parent=1 // pred_check
      _
    $region11: #{tpu_custom_call.1} parent=1 // pred_check_branch
      %18 = sbr.rel (0) target = $region13
    $region12: #{tpu_custom_call.1} parent=1 // pred_region
      _
    $region13: #{tpu_custom_call.1} parent=1 // pred_fallthru
      _
    // Predicated region
    $region14: #{tpu_custom_call.1} parent=1 // pred_check
      _
    $region15: #{tpu_custom_call.1} parent=1 // pred_check_branch
      %20 = sbr.rel (0) target = $region17
    $region16: #{tpu_custom_call.1} parent=1 // pred_region
      _
    $region17: #{tpu_custom_call.1} parent=1 // pred_fallthru
      _
    // Predicated region
    $region18: #{tpu_custom_call.1} parent=1 // pred_check
      _
    $region19: #{tpu_custom_call.1} parent=1 // pred_check_branch
      %22 = sbr.rel (0) target = $region21
    $region20: #{tpu_custom_call.1} parent=1 // pred_region
      _
    $region21: #{tpu_custom_call.1} parent=1 // pred_fallthru
      _
    // Predicated region
    $region22: #{tpu_custom_call.1} parent=1 // pred_check
      _
    $region23: #{tpu_custom_call.1} parent=1 // pred_check_branch
      %24 = sbr.rel (0) target = $region25
    $region24: #{tpu_custom_call.1} parent=1 // pred_region
      _
    $region25: #{tpu_custom_call.1} parent=1 // pred_fallthru
      _
    // Predicated region
    $region26: #{tpu_custom_call.1} parent=1 // pred_check
      _
    $region27: #{tpu_custom_call.1} parent=1 // pred_check_branch
      %26 = sbr.rel (0) target = $region29
    $region28: #{tpu_custom_call.1} parent=1 // pred_region
      _
    $region29: #{tpu_custom_call.1} parent=1 // pred_fallthru
      _
    %p28 = scmp.eq.s32.totalorder 0, 0
    // Predicated region
    $region30: #{tpu_custom_call.1} parent=1 // pred_check
      %p29 = pneg %p28
    $region31: #{tpu_custom_call.1} parent=1 // pred_check_branch
      %31 = sbr.rel (%p29) target = $region33
    $region32: #{tpu_custom_call.1} parent=1 // pred_region
      %vm32 = vcmask 261120
      %33 = vst.msk [vmem:[#allocation2] sm:$0xff] %vm32, 0.0
    $region33: #{tpu_custom_call.1} parent=1 // pred_fallthru
      _
    %v34 = vlaneseq
    %v35 = vand.u32 %v34, 127
    %s36 = smul.u32 0, 128
    %v37 = vstv %s36
    %v38 = vadd.s32 %v35, %v37
    %v39 = vld [vmem:[%s0] sm:$0xff]
    %40 = vset.pattern.permute.xlu0 0
    %41 = vperm.xlu0 %40, %v39
    %v42 = vpop.permute.xlu0 %41
    %vm43 = vcmp.eq.s32.totalorder %v42, %v38
    %v44 = vsel %vm43, 1, 0
    %45 = vset.pattern.permute.xlu0 1
    %46 = vperm.xlu0 %45, %v39
    %v47 = vpop.permute.xlu0 %46
    %vm48 = vcmp.eq.s32.totalorder %v47, %v38
    %v49 = vsel %vm48, 1, 0
    %v50 = vadd.s32 %v44, %v49
    %51 = vset.pattern.permute.xlu0 2
    %52 = vperm.xlu0 %51, %v39
    %v53 = vpop.permute.xlu0 %52
    %vm54 = vcmp.eq.s32.totalorder %v53, %v38
    %v55 = vsel %vm54, 1, 0
    %v56 = vadd.s32 %v50, %v55
    %57 = vset.pattern.permute.xlu0 3
    %58 = vperm.xlu0 %57, %v39
    %v59 = vpop.permute.xlu0 %58
    %vm60 = vcmp.eq.s32.totalorder %v59, %v38
    %v61 = vsel %vm60, 1, 0
    %v62 = vadd.s32 %v56, %v61
    %63 = vset.pattern.permute.xlu0 4
    %64 = vperm.xlu0 %63, %v39
    %v65 = vpop.permute.xlu0 %64
    %vm66 = vcmp.eq.s32.totalorder %v65, %v38
    %v67 = vsel %vm66, 1, 0
    %v68 = vadd.s32 %v62, %v67
    %69 = vset.pattern.permute.xlu0 5
    %70 = vperm.xlu0 %69, %v39
    %v71 = vpop.permute.xlu0 %70
    %vm72 = vcmp.eq.s32.totalorder %v71, %v38
    %v73 = vsel %vm72, 1, 0
    %v74 = vadd.s32 %v68, %v73
    %75 = vset.pattern.permute.xlu0 6
    %76 = vperm.xlu0 %75, %v39
    %v77 = vpop.permute.xlu0 %76
    %vm78 = vcmp.eq.s32.totalorder %v77, %v38
    %v79 = vsel %vm78, 1, 0
    %v80 = vadd.s32 %v74, %v79
    %81 = vset.pattern.permute.xlu0 7
    %82 = vperm.xlu0 %81, %v39
    %v83 = vpop.permute.xlu0 %82
    %vm84 = vcmp.eq.s32.totalorder %v83, %v38
    %v85 = vsel %vm84, 1, 0
    %v86 = vadd.s32 %v80, %v85
    %v87 = vld [vmem:[%s2] sm:$0xf]
    %v88 = vld [vmem:[%s2 + $0x4] sm:$0xf]
    %v89 = vld [vmem:[%s2 + $0x8] sm:$0xf]
    %v90 = vld [vmem:[%s2 + $0xc] sm:$0xf]
    %v91 = vld [vmem:[%s2 + $0x10] sm:$0xf]
    %v92 = vld [vmem:[%s2 + $0x14] sm:$0xf]
    %v93 = vld [vmem:[%s2 + $0x18] sm:$0xf]
    %v94 = vld [vmem:[%s2 + $0x1c] sm:$0xf]
    %v95 = vld [vmem:[%s2 + $0x20] sm:$0xf]
    %v96 = vld [vmem:[%s2 + $0x24] sm:$0xf]
    %v97 = vld [vmem:[%s2 + $0x28] sm:$0xf]
    %v98 = vld [vmem:[%s2 + $0x2c] sm:$0xf]
    %v99 = vld [vmem:[%s2 + $0x30] sm:$0xf]
    %v100 = vld [vmem:[%s2 + $0x34] sm:$0xf]
    %v101 = vld [vmem:[%s2 + $0x38] sm:$0xf]
    %v102 = vld [vmem:[%s2 + $0x3c] sm:$0xf]
    %v103 = vcvt.s32.f32 %v86
    %v104 = vpack.c.bf16 %v103, %v103
    %v105 = vld [vmem:[#allocation2] sm:$0xff]
    %v122 = vunpack.c.l.b16 %v87
    %v123 = vunpack.c.l.b16 %v88
    %v124 = vunpack.c.l.b16 %v89
    %v125 = vunpack.c.l.b16 %v90
    %v126 = vunpack.c.l.b16 %v91
    %v127 = vunpack.c.l.b16 %v92
    %v128 = vunpack.c.l.b16 %v93
    %v129 = vunpack.c.l.b16 %v94
    %v130 = vunpack.c.l.b16 %v95
    %v131 = vunpack.c.l.b16 %v96
    %v132 = vunpack.c.l.b16 %v97
    %v133 = vunpack.c.l.b16 %v98
    %v134 = vunpack.c.l.b16 %v99
    %v135 = vunpack.c.l.b16 %v100
    %v136 = vunpack.c.l.b16 %v101
    %v137 = vunpack.c.l.b16 %v102
    %v138 = vpack.c.b16 %v123, %v122
    %v139 = vpack.c.b16 %v125, %v124
    %v140 = vpack.c.b16 %v127, %v126
    %v141 = vpack.c.b16 %v129, %v128
    %v142 = vpack.c.b16 %v131, %v130
    %v143 = vpack.c.b16 %v133, %v132
    %v144 = vpack.c.b16 %v135, %v134
    %v145 = vpack.c.b16 %v137, %v136
    %154 = vmatprep.subr.bf16.mxu0 0
    %155 = vmatpush1.bf16.msra.mxu0 %v145
    %156 = vmatprep.subr.bf16.mxu0 0
    %157 = vmatpush1.bf16.msra.mxu0 %v144
    %158 = vmatprep.subr.bf16.mxu0 0
    %159 = vmatpush1.bf16.msra.mxu0 %v143
    %160 = vmatprep.subr.bf16.mxu0 0
    %161 = vmatpush1.bf16.msra.mxu0 %v142
    %162 = vmatprep.subr.bf16.mxu0 0
    %163 = vmatpush1.bf16.msra.mxu0 %v141
    %164 = vmatprep.subr.bf16.mxu0 0
    %165 = vmatpush1.bf16.msra.mxu0 %v140
    %166 = vmatprep.subr.bf16.mxu0 0
    %167 = vmatpush1.bf16.msra.mxu0 %v139
    %168 = vmatprep.subr.bf16.mxu0 0
    %169 = vmatpush1.bf16.msra.mxu0 %v138
    %170 = vmatprep.subr.bf16.mxu0 0
    %171 = vmatpush2.bf16.msra.mxu0 0
    %172 = vmatprep.subr.bf16.mxu0 0
    %173 = vmatpush2.bf16.msra.mxu0 0
    %174 = vmatprep.subr.bf16.mxu0 0
    %175 = vmatpush2.bf16.msra.mxu0 0
    %176 = vmatprep.subr.bf16.mxu0 0
    %177 = vmatpush2.bf16.msra.mxu0 0
    %178 = vmatprep.subr.bf16.mxu0 0
    %179 = vmatpush2.bf16.msra.mxu0 0
    %180 = vmatprep.subr.bf16.mxu0 0
    %181 = vmatpush2.bf16.msra.mxu0 0
    %182 = vmatprep.subr.bf16.mxu0 0
    %183 = vmatpush2.bf16.msra.mxu0 0
    %184 = vmatprep.subr.bf16.mxu0 0
    %185 = vmatpush2.bf16.msra.mxu0 0
    %186 = vmatprep.mubr.bf16.mxu0 0
    %187 = vmatmul.mubr.bf16.gmra.mxu0 %v104
    %v188 = vpop.f32.mrf.mxu0
    %v189 = vadd.f32 0.0, %v188
    %v190 = vpop.f32.mrf.mxu0
    %v191 = vpop.f32.mrf.mxu0
    %v192 = vpop.f32.mrf.mxu0
    %193 = vdwg.mxu0
    %v194 = vadd.f32 %v105, %v189
    %vm195 = vcmask 261120
    %196 = vst.msk [vmem:[#allocation2] sm:$0xff] %vm195, %v194
    // Predicated region
    $region34: #{tpu_custom_call.1} parent=1 // pred_check
      %p197 = pneg %p28
    $region35: #{tpu_custom_call.1} parent=1 // pred_check_branch
      %199 = sbr.rel (%p197) target = $region37
    $region36: #{tpu_custom_call.1} parent=1 // pred_region
      %v200 = vld [vmem:[%s1] sm:$0xff]
      %v201 = vcvt.s32.f32 %v200
      %v202 = vmax.f32 %v201, 1.0
      %v203 = vld [vmem:[#allocation2] sm:$0xff]
      %205 = vset.pattern.permute.xlu0 0
      %206 = vperm.xlu0 %205, %v202
      %v207 = vpop.permute.xlu0 %206
      %v209 = vrcp.pop %v207
      %v210 = vmul.f32 %v203, %v209
      %v211 = vld [vmem:[%s3] sm:$0xff]
      %v212 = vld [vmem:[%s3 + $0x8] sm:$0xff]
      %v213 = vld [vmem:[%s3 + $0x10] sm:$0xff]
      %v214 = vld [vmem:[%s3 + $0x18] sm:$0xff]
      %v215 = vld [vmem:[%s4] sm:$0x1]
      %v217 = vlaneseq
      %v218 = vshrl.u32 %v217, 7
      %v219 = vsub.s32 0, %v218
      %v220 = vrot.slane %v215, %v219
      %v223 = vsel %vm195, %v210, 0
      %225 = vmatprep.subr.mxu0 0.0
      %226 = vmatpush1.msra.mxu0 0.0
      %227 = vmatprep.subr.mxu0 0.0
      %228 = vmatpush1.msra.mxu0 0.0
      %229 = vmatprep.subr.mxu0 0.0
      %230 = vmatpush1.msra.mxu0 0.0
      %231 = vmatprep.subr.mxu0 0.0
      %232 = vmatpush1.msra.mxu0 0.0
      %233 = vmatprep.subr.mxu0 0.0
      %234 = vmatpush1.msra.mxu0 0.0
      %235 = vmatprep.subr.mxu0 0.0
      %236 = vmatpush1.msra.mxu0 0.0
      %237 = vmatprep.subr.mxu0 0.0
      %238 = vmatpush1.msra.mxu0 0.0
      %239 = vmatprep.subr.mxu0 0.0
      %240 = vmatpush1.msra.mxu0 0.0
      %241 = vmatprep.subr.mxu0 0.0
      %242 = vmatpush1.msra.mxu0 0.0
      %243 = vmatprep.subr.mxu0 0.0
      %244 = vmatpush1.msra.mxu0 0.0
      %245 = vmatprep.subr.mxu0 0.0
      %246 = vmatpush1.msra.mxu0 0.0
      %247 = vmatprep.subr.mxu0 0.0
      %248 = vmatpush1.msra.mxu0 0.0
      %249 = vmatprep.subr.mxu0 0.0
      %250 = vmatpush1.msra.mxu0 %v214
      %251 = vmatprep.subr.mxu0 0.0
      %252 = vmatpush1.msra.mxu0 %v213
      %253 = vmatprep.subr.mxu0 0.0
      %254 = vmatpush1.msra.mxu0 %v212
      %255 = vmatprep.subr.mxu0 0.0
      %256 = vmatpush1.msra.mxu0 %v211
      %257 = vmatprep.subr.mxu0 0.0
      %258 = vmatpush2.msra.mxu0 0.0
      %259 = vmatprep.subr.mxu0 0.0
      %260 = vmatpush2.msra.mxu0 0.0
      %261 = vmatprep.subr.mxu0 0.0
      %262 = vmatpush2.msra.mxu0 0.0
      %263 = vmatprep.subr.mxu0 0.0
      %264 = vmatpush2.msra.mxu0 0.0
      %265 = vmatprep.subr.mxu0 0.0
      %266 = vmatpush2.msra.mxu0 0.0
      %267 = vmatprep.subr.mxu0 0.0
      %268 = vmatpush2.msra.mxu0 0.0
      %269 = vmatprep.subr.mxu0 0.0
      %270 = vmatpush2.msra.mxu0 0.0
      %271 = vmatprep.subr.mxu0 0.0
      %272 = vmatpush2.msra.mxu0 0.0
      %273 = vmatprep.subr.mxu0 0.0
      %274 = vmatpush2.msra.mxu0 0.0
      %275 = vmatprep.subr.mxu0 0.0
      %276 = vmatpush2.msra.mxu0 0.0
      %277 = vmatprep.subr.mxu0 0.0
      %278 = vmatpush2.msra.mxu0 0.0
      %279 = vmatprep.subr.mxu0 0.0
      %280 = vmatpush2.msra.mxu0 0.0
      %281 = vmatprep.subr.mxu0 0.0
      %282 = vmatpush2.msra.mxu0 0.0
      %283 = vmatprep.subr.mxu0 0.0
      %284 = vmatpush2.msra.mxu0 0.0
      %285 = vmatprep.subr.mxu0 0.0
      %286 = vmatpush2.msra.mxu0 0.0
      %287 = vmatprep.subr.mxu0 0.0
      %288 = vmatpush2.msra.mxu0 0.0
      %289 = vmatprep.mubr.f32.mxu0 0.0
      %290 = vmatmul.mubr.f32.gmra.mxu0 %v223
      %v291 = vpop.f32.mrf.mxu0
      %v292 = vadd.f32 %v220, %v291
      %v293 = vpop.f32.mrf.mxu0
      %294 = vdwg.mxu0
      %v295 = vtanh.pop %v292
      %v296 = vld [vmem:[%s5] sm:$0xff]
      %v297 = vld [vmem:[%s5 + $0x8] sm:$0xff]
      %v298 = vld [vmem:[%s5 + $0x10] sm:$0xff]
      %v299 = vld [vmem:[%s5 + $0x18] sm:$0xff]
      %v300 = vld [vmem:[%s6] sm:$0x1]
      %v302 = vlaneseq
      %v303 = vshrl.u32 %v302, 7
      %v304 = vsub.s32 0, %v303
      %v305 = vrot.slane %v300, %v304
      %v308 = vsel %vm195, %v295, 0
      %310 = vmatprep.subr.mxu0 0.0
      %311 = vmatpush1.msra.mxu0 0.0
      %312 = vmatprep.subr.mxu0 0.0
      %313 = vmatpush1.msra.mxu0 0.0
      %314 = vmatprep.subr.mxu0 0.0
      %315 = vmatpush1.msra.mxu0 0.0
      %316 = vmatprep.subr.mxu0 0.0
      %317 = vmatpush1.msra.mxu0 0.0
      %318 = vmatprep.subr.mxu0 0.0
      %319 = vmatpush1.msra.mxu0 0.0
      %320 = vmatprep.subr.mxu0 0.0
      %321 = vmatpush1.msra.mxu0 0.0
      %322 = vmatprep.subr.mxu0 0.0
      %323 = vmatpush1.msra.mxu0 0.0
      %324 = vmatprep.subr.mxu0 0.0
      %325 = vmatpush1.msra.mxu0 0.0
      %326 = vmatprep.subr.mxu0 0.0
      %327 = vmatpush1.msra.mxu0 0.0
      %328 = vmatprep.subr.mxu0 0.0
      %329 = vmatpush1.msra.mxu0 0.0
      %330 = vmatprep.subr.mxu0 0.0
      %331 = vmatpush1.msra.mxu0 0.0
      %332 = vmatprep.subr.mxu0 0.0
      %333 = vmatpush1.msra.mxu0 0.0
      %334 = vmatprep.subr.mxu0 0.0
      %335 = vmatpush1.msra.mxu0 %v299
      %336 = vmatprep.subr.mxu0 0.0
      %337 = vmatpush1.msra.mxu0 %v298
      %338 = vmatprep.subr.mxu0 0.0
      %339 = vmatpush1.msra.mxu0 %v297
      %340 = vmatprep.subr.mxu0 0.0
      %341 = vmatpush1.msra.mxu0 %v296
      %342 = vmatprep.subr.mxu0 0.0
      %343 = vmatpush2.msra.mxu0 0.0
      %344 = vmatprep.subr.mxu0 0.0
      %345 = vmatpush2.msra.mxu0 0.0
      %346 = vmatprep.subr.mxu0 0.0
      %347 = vmatpush2.msra.mxu0 0.0
      %348 = vmatprep.subr.mxu0 0.0
      %349 = vmatpush2.msra.mxu0 0.0
      %350 = vmatprep.subr.mxu0 0.0
      %351 = vmatpush2.msra.mxu0 0.0
      %352 = vmatprep.subr.mxu0 0.0
      %353 = vmatpush2.msra.mxu0 0.0
      %354 = vmatprep.subr.mxu0 0.0
      %355 = vmatpush2.msra.mxu0 0.0
      %356 = vmatprep.subr.mxu0 0.0
      %357 = vmatpush2.msra.mxu0 0.0
      %358 = vmatprep.subr.mxu0 0.0
      %359 = vmatpush2.msra.mxu0 0.0
      %360 = vmatprep.subr.mxu0 0.0
      %361 = vmatpush2.msra.mxu0 0.0
      %362 = vmatprep.subr.mxu0 0.0
      %363 = vmatpush2.msra.mxu0 0.0
      %364 = vmatprep.subr.mxu0 0.0
      %365 = vmatpush2.msra.mxu0 0.0
      %366 = vmatprep.subr.mxu0 0.0
      %367 = vmatpush2.msra.mxu0 0.0
      %368 = vmatprep.subr.mxu0 0.0
      %369 = vmatpush2.msra.mxu0 0.0
      %370 = vmatprep.subr.mxu0 0.0
      %371 = vmatpush2.msra.mxu0 0.0
      %372 = vmatprep.subr.mxu0 0.0
      %373 = vmatpush2.msra.mxu0 0.0
      %374 = vmatprep.mubr.f32.mxu0 0.0
      %375 = vmatmul.mubr.f32.gmra.mxu0 %v308
      %v376 = vpop.f32.mrf.mxu0
      %v377 = vadd.f32 %v305, %v376
      %v378 = vpop.f32.mrf.mxu0
      %379 = vdwg.mxu0
      %380 = vst [vmem:[#allocation3] sm:$0xff] %v377
    $region37: #{tpu_custom_call.1} parent=1 // pred_fallthru
      _
    // Predicated region
    $region38: #{tpu_custom_call.1} parent=1 // pred_check
      _
    $region39: #{tpu_custom_call.1} parent=1 // pred_check_branch
      %382 = sbr.rel (0) target = $region41
    $region40: #{tpu_custom_call.1} parent=1 // pred_region
      %s384 = ssub.s32 128, 128
      %385 = vsyncadd [#allocation4], %s384
      %s387 = sshll.u32 [#allocation3], 4
      %s388 = int_to_ptr.vmem [resolvable:$true] %s387
      %390 = dma.vmem_to_hbm [thread:$0]  %s388, 128, %s7, [#allocation4]
    $region41: #{tpu_custom_call.1} parent=1 // pred_fallthru
      _
    // Predicated region
    $region42: #{tpu_custom_call.1} parent=1 // pred_check
      _
    $region43: #{tpu_custom_call.1} parent=1 // pred_check_branch
      %392 = sbr.rel (0) target = $region45
    $region44: #{tpu_custom_call.1} parent=1 // pred_region
      %393 = dma.done [#allocation4], 128
    $region45: #{tpu_custom_call.1} parent=1 // pred_fallthru
      _
    %394 = vsyncpa [#allocation4], 1

</llo_original>
